<compile_context>
chip_gen: v5e
topology: v5e:2x2
jax: 0.10.0
libtpu: 0.0.40
codegen_flags: <defaults>
</compile_context>

<pallas_src>
import functools
import math

import jax
import jax.numpy as jnp
from jax import lax
from jax.experimental import pallas as pl
from jax.experimental.pallas import tpu as pltpu


# ----------------------------------------------------------------------------
# Kernel
# ----------------------------------------------------------------------------
def _attn_kernel(ref_ref, q_ref, wr_ref, br_ref, v_ref, e_ref, logit_ref,
                 *, use_tanh: bool, C: float, tanh_dtype):
    # Per grid step (one (tb batch rows) x (ts source positions) tile):
    #   ref_ref   : (tb, Din, ts)  encoder states, S in lanes
    #   q_ref     : (tb, Dout, 1)  Wq @ query^T + bq (hoisted projection)
    #   wr_ref    : (Dout, Din)    project_ref (Conv1d k=1) weight (resident)
    #   br_ref    : (Dout, 1)      project_ref bias (resident)
    #   v_ref     : (Dout, 1)      attention vector v (resident)
    #   e_ref     : (tb, Dout, ts) output e tile -- already in final layout
    #   logit_ref : (tb, 1, ts)    output logits tile -- already in final layout
    tb, Dout, ts = e_ref.shape
    wr = wr_ref[...]                                                # (Dout, Din)
    # Hoist b-independent broadcasts out of the loop (no CSE of broadcast_in_dim).
    br_b = jnp.broadcast_to(br_ref[...], (Dout, ts))                # (Dout, ts) f32
    v_b = jnp.broadcast_to(v_ref[...], (Dout, ts)).astype(tanh_dtype)

    def body(b, carry):
        r_b = ref_ref[b]                                            # (Din, ts)
        # e_b = Wr @ ref_b + br  : MXU matmul with N = ts lanes (well filled).
        e_b = jnp.dot(wr, r_b, preferred_element_type=jnp.float32) + br_b
        e_ref[b] = e_b.astype(e_ref.dtype)                          # lane-dense slab store
        # u_b = v^T tanh(q_b + e_b) : elementwise tanh (+ optional bf16 on the
        # EUP for v6e/v7x), VPU multiply, sublane reduction, f32 accumulation.
        t_b = jnp.tanh((e_b + q_ref[b]).astype(tanh_dtype))         # (Dout, ts)
        u_b = jnp.sum((v_b * t_b).astype(jnp.float32),
                      axis=0, keepdims=True)                        # (1, ts)
        if use_tanh:
            u_b = C * jnp.tanh(u_b)
        logit_ref[b] = u_b.astype(logit_ref.dtype)
        return carry

    if tb <= 4:
        unroll = True
    elif tb % 2 == 0:
        unroll = 2        # keep live (Dout, ts) tiles from spilling the vreg file
    else:
        unroll = 1
    lax.fori_loop(0, tb, body, 0, unroll=unroll)


# ----------------------------------------------------------------------------
# Generation-aware configuration / tile picking
# ----------------------------------------------------------------------------
def _tpu_generation():
    try:
        kind = jax.devices()[0].device_kind.lower()
    except Exception:
        return "unknown"
    for tag in ("v7", "v6", "v5", "v4", "v3", "v2"):
        if tag in kind:
            return tag
    return "unknown"


def _gen_config():
    gen = _tpu_generation()
    if gen == "v7":
        # 64 MiB VMEM per TC: keep tiles and the scoped limit well under it.
        return dict(budget=12 << 20, vmem_limit=48 << 20, fast_tanh=True)
    if gen == "v6":
        # 128 MiB VMEM, 32 MiB default scoped limit: raise both.
        return dict(budget=28 << 20, vmem_limit=80 << 20, fast_tanh=True)
    if gen == "v5":
        # v5e: 16 MiB default scoped limit -> set it explicitly; no bf16 EUP.
        return dict(budget=12 << 20, vmem_limit=64 << 20, fast_tanh=False)
    return dict(budget=12 << 20, vmem_limit=None, fast_tanh=False)


def _largest_divisor_le(n, cap):
    cap = max(1, min(n, cap))
    for d in range(cap, 0, -1):
        if n % d == 0:
            return d
    return 1


def _pick_tiles(B, S, Din, Dout, budget_bytes, ref_itemsize=4):
    """Pick (tb, ts, s_pad): batch tile, S (lane) tile, padded S.

    Budget counts the double-buffered ref input tile plus the double-buffered
    e / logits output tiles.  ts is either == S (small S) or a multiple of 128
    (lane constraint); S is padded up to a multiple of ts otherwise, so we never
    fall back to an oversized full-S block.
    """
    per_b_per_s = 2 * (Din * ref_itemsize + Dout * 4 + 4)
    tb_cap = max(1, budget_bytes // (per_b_per_s * min(S, 128)))
    tb = _largest_divisor_le(B, min(16, tb_cap))
    cap_ts = max(128, budget_bytes // (per_b_per_s * tb))
    if S <= 512 and S <= cap_ts:
        ts = S                              # block dim == full array dim is legal
    else:
        ts = 128
        # grow the lane tile while it fits the budget AND we keep >=2 S-tiles
        # (so dimension_semantics="parallel" can shard across v7x's 2 TCs).
        while ts * 2 <= min(cap_ts, 2048) and -(-S // (ts * 2)) >= 2:
            ts *= 2
    s_pad = -(-S // ts) * ts
    return tb, ts, s_pad


# ----------------------------------------------------------------------------
# Wrapper
# ----------------------------------------------------------------------------
def attention_forward(query, ref, params, *, use_tanh=False, C=10.0,
                      tanh_dtype=None, compute_dtype=jnp.float32,
                      tb=None, ts=None):
    """query: (B, out_dim) f32; ref: (S, in_dim, B) f32 (PyTorch convention)."""
    wq, bq, wr, br, v = params
    B, Dout = query.shape
    S, Din, Bref = ref.shape
    assert Bref == B

    cfg = _gen_config()
    if tanh_dtype is None:
        tanh_dtype = jnp.bfloat16 if cfg["fast_tanh"] else jnp.float32

    # Hoisted query projection: one well-shaped (B,Dout)x(Dout,Dout) matmul.
    q_proj = (jnp.dot(query, wq.T) + bq).astype(jnp.float32)        # (B, Dout)
    q3 = q_proj.reshape(B, Dout, 1)

    # Relayout ref once so S is the lane dimension of every block / output.
    # In steady-state decoding ref is fixed across steps, so callers should
    # hoist this (pass ref already as (B, Din, S)); here it replaces the old
    # per-call transpose of e, which was strictly larger recurring traffic.
    ref_bds = jnp.transpose(ref, (2, 1, 0)).astype(compute_dtype)   # (B, Din, S)
    wr_c = wr.astype(compute_dtype)
    br2 = br.reshape(Dout, 1).astype(jnp.float32)
    v2 = v.reshape(Dout, 1).astype(jnp.float32)

    itemsize = jnp.dtype(compute_dtype).itemsize
    atb, ats, _ = _pick_tiles(B, S, Din, Dout, cfg["budget"], itemsize)
    if tb is None:
        tb = atb
    if ts is None:
        ts = ats
    assert B % tb == 0
    assert ts % 128 == 0 or ts >= S
    s_pad = -(-S // ts) * ts

    if s_pad != S:
        ref_bds = jnp.pad(ref_bds, ((0, 0), (0, 0), (0, s_pad - S)))

    grid = (B // tb, s_pad // ts)
    kernel = functools.partial(_attn_kernel, use_tanh=use_tanh, C=float(C),
                               tanh_dtype=tanh_dtype)

    e_pad, logits_pad = pl.pallas_call(
        kernel,
        out_shape=(
            jax.ShapeDtypeStruct((B, Dout, s_pad), jnp.float32),   # e, final layout
            jax.ShapeDtypeStruct((B, 1, s_pad), jnp.float32),      # logits, final layout
        ),
        grid=grid,
        in_specs=[
            pl.BlockSpec((tb, Din, ts), lambda b, s: (b, 0, s)),   # ref (B-major, S lanes)
            pl.BlockSpec((tb, Dout, 1), lambda b, s: (b, 0, 0)),   # q_proj (per-b resident)
            pl.BlockSpec((Dout, Din), lambda b, s: (0, 0)),        # Wr (resident)
            pl.BlockSpec((Dout, 1), lambda b, s: (0, 0)),          # br (resident)
            pl.BlockSpec((Dout, 1), lambda b, s: (0, 0)),          # v (resident)
        ],
        out_specs=(
            pl.BlockSpec((tb, Dout, ts), lambda b, s: (b, 0, s)),
            pl.BlockSpec((tb, 1, ts), lambda b, s: (b, 0, s)),
        ),
        compiler_params=pltpu.CompilerParams(
            dimension_semantics=("parallel", "parallel"),
            vmem_limit_bytes=cfg["vmem_limit"]),
    )(ref_bds, q3, wr_c, br2, v2)

    if s_pad != S:
        e = e_pad[:, :, :S]
        logits = logits_pad[:, 0, :S]
    else:
        e = e_pad
        logits = logits_pad[:, 0, :]
    return e, logits


# ----------------------------------------------------------------------------
# Parameters / reference
# ----------------------------------------------------------------------------
def init_params(key, in_dim, out_dim):
    """Deterministic synthetic parameters matching the PyTorch module shapes."""
    k1, k2, k3, k4, k5 = jax.random.split(key, 5)
    bq_bound = 1.0 / math.sqrt(out_dim)
    br_bound = 1.0 / math.sqrt(in_dim)
    v_bound = 1.0 / math.sqrt(out_dim)
    wq = jax.random.uniform(k1, (out_dim, out_dim), jnp.float32, -bq_bound, bq_bound)
    bq = jax.random.uniform(k2, (out_dim,), jnp.float32, -bq_bound, bq_bound)
    # Conv1d(in_dim, out_dim, 1) weight is (out_dim, in_dim, 1); k=1 squeezed away.
    wr = jax.random.uniform(k3, (out_dim, in_dim), jnp.float32, -br_bound, br_bound)
    br = jax.random.uniform(k4, (out_dim,), jnp.float32, -br_bound, br_bound)
    v = jax.random.uniform(k5, (out_dim,), jnp.float32, -v_bound, v_bound)
    return wq, bq, wr, br, v


def reference_forward(query, ref, params, *, use_tanh=False, C=10.0):
    """Pure-JAX replica of the PyTorch forward, for correctness checking."""
    wq, bq, wr, br, v = params
    ref_p = jnp.transpose(ref, (2, 1, 0))                                # (B, Din, S)
    q = query @ wq.T + bq                                                # (B, Dout)
    e = jnp.einsum('oi,bis->bos', wr, ref_p) + br[None, :, None]         # (B, Dout, S)
    u = jnp.einsum('o,bos->bs', v, jnp.tanh(q[:, :, None] + e))          # (B, S)
    logits = C * jnp.tanh(u) if use_tanh else u
    return e, logits


if __name__ == "__main__":
    B, S, IN_DIM, OUT_DIM = 2, 8, 16, 32
    USE_TANH, C = True, 10.0

    key = jax.random.PRNGKey(0)
    kq, kr, kp = jax.random.split(key, 3)
    query = jax.random.normal(kq, (B, OUT_DIM), jnp.float32)
    ref = jax.random.normal(kr, (S, IN_DIM, B), jnp.float32)   # sourceL x hidden x batch
    params = init_params(kp, IN_DIM, OUT_DIM)

    e_gold, logits_gold = reference_forward(query, ref, params, use_tanh=USE_TANH, C=C)

    # 1) strict f32 path: exact (to tolerance) match against the reference.
    e, logits = attention_forward(query, ref, params, use_tanh=USE_TANH, C=C,
                                  tanh_dtype=jnp.float32)
    jax.block_until_ready((e, logits))
    assert e.shape == (B, OUT_DIM, S) and logits.shape == (B, S)
    assert jnp.allclose(e, e_gold, atol=1e-4, rtol=1e-4)
    assert jnp.allclose(logits, logits_gold, atol=1e-4, rtol=1e-4)

    # 2) auto path (bf16 tanh on v6e/v7x, f32 elsewhere): e is unaffected,
    #    logits get a looser tolerance for the reduced-precision tanh.
    e2, logits2 = attention_forward(query, ref, params, use_tanh=USE_TANH, C=C)
    jax.block_until_ready((e2, logits2))
    assert jnp.allclose(e2, e_gold, atol=1e-4, rtol=1e-4)
    assert jnp.allclose(logits2, logits_gold, atol=5e-1, rtol=5e-2)

    print("KERNEL_OK")
</pallas_src>

<mosaic_0001>
module attributes {stable_mosaic.version = 11 : i64} {
  func.func @_attn_kernel(%arg0: i32, %arg1: i32, %arg2: memref<2x16x8xf32, #tpu.memory_space<vmem>>, %arg3: memref<2x32x1xf32, #tpu.memory_space<vmem>>, %arg4: memref<32x16xf32, #tpu.memory_space<vmem>>, %arg5: memref<32x1xf32, #tpu.memory_space<vmem>>, %arg6: memref<32x1xf32, #tpu.memory_space<vmem>>, %arg7: memref<2x32x8xf32, #tpu.memory_space<vmem>>, %arg8: memref<2x1x8xf32, #tpu.memory_space<vmem>>) attributes {dimension_semantics = [#tpu.dimension_semantics<parallel>, #tpu.dimension_semantics<parallel>], iteration_bounds = array<i64: 1, 1>, scalar_prefetch = 0 : i64, scratch_operands = 0 : i64, tpu.core_type = #tpu.core_type<tc>, window_params = [{transform_indices = @transform_0, window_bounds = array<i64: 2, 16, 8>}, {transform_indices = @transform_1, window_bounds = array<i64: 2, 32, 1>}, {pipeline_mode = #tpu.pipeline_mode<synchronous>, transform_indices = @transform_2, window_bounds = array<i64: 32, 16>}, {pipeline_mode = #tpu.pipeline_mode<synchronous>, transform_indices = @transform_3, window_bounds = array<i64: 32, 1>}, {pipeline_mode = #tpu.pipeline_mode<synchronous>, transform_indices = @transform_4, window_bounds = array<i64: 32, 1>}, {transform_indices = @transform_5, window_bounds = array<i64: 2, 32, 8>}, {transform_indices = @transform_6, window_bounds = array<i64: 2, 1, 8>}]} {
    %c0 = arith.constant 0 : index
    %c0_0 = arith.constant 0 : index
    %0 = vector.load %arg4[%c0, %c0_0] : memref<32x16xf32, #tpu.memory_space<vmem>>, vector<32x16xf32>
    %c0_1 = arith.constant 0 : index
    %c0_2 = arith.constant 0 : index
    %1 = vector.load %arg5[%c0_1, %c0_2] : memref<32x1xf32, #tpu.memory_space<vmem>>, vector<32x1xf32>
    %2 = vector.shape_cast %1 : vector<32x1xf32> to vector<32x1xf32>
    %3 = vector.broadcast %2 : vector<32x1xf32> to vector<32x8xf32>
    %c0_3 = arith.constant 0 : index
    %c0_4 = arith.constant 0 : index
    %4 = vector.load %arg6[%c0_3, %c0_4] : memref<32x1xf32, #tpu.memory_space<vmem>>, vector<32x1xf32>
    %5 = vector.shape_cast %4 : vector<32x1xf32> to vector<32x1xf32>
    %6 = vector.broadcast %5 : vector<32x1xf32> to vector<32x8xf32>
    %c0_i32 = arith.constant 0 : i32
    %7 = arith.index_cast %c0_i32 : i32 to index
    %c0_5 = arith.constant 0 : index
    %c0_6 = arith.constant 0 : index
    %8 = vector.load %arg2[%7, %c0_5, %c0_6] : memref<2x16x8xf32, #tpu.memory_space<vmem>>, vector<1x16x8xf32>
    %9 = vector.shape_cast %8 : vector<1x16x8xf32> to vector<16x8xf32>
    %cst = arith.constant dense<0.000000e+00> : vector<32x8xf32>
    %10 = tpu.matmul %0, %9, %cst {dimension_numbers = #tpu.dot_dimension_numbers<[1], [0], [0], [1], [0, 0, 1, 1], [], []>} : vector<32x16xf32>, vector<16x8xf32>, vector<32x8xf32> -> vector<32x8xf32>
    %11 = arith.addf %10, %3 : vector<32x8xf32>
    %12 = arith.index_cast %c0_i32 : i32 to index
    %c0_7 = arith.constant 0 : index
    %c0_8 = arith.constant 0 : index
    %13 = vector.load %arg7[%12, %c0_7, %c0_8] : memref<2x32x8xf32, #tpu.memory_space<vmem>>, vector<1x32x8xf32>
    %14 = vector.shape_cast %13 : vector<1x32x8xf32> to vector<32x8xf32>
    %15 = vector.shape_cast %11 : vector<32x8xf32> to vector<1x32x8xf32>
    tpu.vector_store %arg7[%12, %c0_7, %c0_8], %15 {strides = array<i32>} : memref<2x32x8xf32, #tpu.memory_space<vmem>>, vector<1x32x8xf32>,
    %16 = arith.index_cast %c0_i32 : i32 to index
    %c0_9 = arith.constant 0 : index
    %c0_10 = arith.constant 0 : index
    %17 = vector.load %arg3[%16, %c0_9, %c0_10] : memref<2x32x1xf32, #tpu.memory_space<vmem>>, vector<1x32x1xf32>
    %18 = vector.shape_cast %17 : vector<1x32x1xf32> to vector<32x1xf32>
    %19 = vector.broadcast %18 : vector<32x1xf32> to vector<32x8xf32>
    %20 = arith.addf %11, %19 : vector<32x8xf32>
    %21 = math.tanh %20 : vector<32x8xf32>
    %22 = arith.mulf %6, %21 : vector<32x8xf32>
    %cst_11 = arith.constant dense<0.000000e+00> : vector<8xf32>
    %23 = vector.multi_reduction <add>, %22, %cst_11 [0] : vector<32x8xf32> to vector<8xf32>
    %24 = vector.shape_cast %23 : vector<8xf32> to vector<1x8xf32>
    %25 = math.tanh %24 : vector<1x8xf32>
    %cst_12 = arith.constant 1.000000e+01 : f32
    %26 = vector.broadcast %cst_12 : f32 to vector<1x8xf32>
    %27 = arith.mulf %26, %25 : vector<1x8xf32>
    %28 = arith.index_cast %c0_i32 : i32 to index
    %c0_13 = arith.constant 0 : index
    %c0_14 = arith.constant 0 : index
    %29 = vector.load %arg8[%28, %c0_13, %c0_14] : memref<2x1x8xf32, #tpu.memory_space<vmem>>, vector<1x1x8xf32>
    %30 = vector.shape_cast %29 : vector<1x1x8xf32> to vector<1x8xf32>
    %31 = vector.shape_cast %27 : vector<1x8xf32> to vector<1x1x8xf32>
    tpu.vector_store %arg8[%28, %c0_13, %c0_14], %31 {strides = array<i32>} : memref<2x1x8xf32, #tpu.memory_space<vmem>>, vector<1x1x8xf32>,
    %c1_i32 = arith.constant 1 : i32
    %32 = arith.index_cast %c1_i32 : i32 to index
    %c0_15 = arith.constant 0 : index
    %c0_16 = arith.constant 0 : index
    %33 = vector.load %arg2[%32, %c0_15, %c0_16] : memref<2x16x8xf32, #tpu.memory_space<vmem>>, vector<1x16x8xf32>
    %34 = vector.shape_cast %33 : vector<1x16x8xf32> to vector<16x8xf32>
    %cst_17 = arith.constant dense<0.000000e+00> : vector<32x8xf32>
    %35 = tpu.matmul %0, %34, %cst_17 {dimension_numbers = #tpu.dot_dimension_numbers<[1], [0], [0], [1], [0, 0, 1, 1], [], []>} : vector<32x16xf32>, vector<16x8xf32>, vector<32x8xf32> -> vector<32x8xf32>
    %36 = arith.addf %35, %3 : vector<32x8xf32>
    %37 = arith.index_cast %c1_i32 : i32 to index
    %c0_18 = arith.constant 0 : index
    %c0_19 = arith.constant 0 : index
    %38 = vector.load %arg7[%37, %c0_18, %c0_19] : memref<2x32x8xf32, #tpu.memory_space<vmem>>, vector<1x32x8xf32>
    %39 = vector.shape_cast %38 : vector<1x32x8xf32> to vector<32x8xf32>
    %40 = vector.shape_cast %36 : vector<32x8xf32> to vector<1x32x8xf32>
    tpu.vector_store %arg7[%37, %c0_18, %c0_19], %40 {strides = array<i32>} : memref<2x32x8xf32, #tpu.memory_space<vmem>>, vector<1x32x8xf32>,
    %41 = arith.index_cast %c1_i32 : i32 to index
    %c0_20 = arith.constant 0 : index
    %c0_21 = arith.constant 0 : index
    %42 = vector.load %arg3[%41, %c0_20, %c0_21] : memref<2x32x1xf32, #tpu.memory_space<vmem>>, vector<1x32x1xf32>
    %43 = vector.shape_cast %42 : vector<1x32x1xf32> to vector<32x1xf32>
    %44 = vector.broadcast %43 : vector<32x1xf32> to vector<32x8xf32>
    %45 = arith.addf %36, %44 : vector<32x8xf32>
    %46 = math.tanh %45 : vector<32x8xf32>
    %47 = arith.mulf %6, %46 : vector<32x8xf32>
    %cst_22 = arith.constant dense<0.000000e+00> : vector<8xf32>
    %48 = vector.multi_reduction <add>, %47, %cst_22 [0] : vector<32x8xf32> to vector<8xf32>
    %49 = vector.shape_cast %48 : vector<8xf32> to vector<1x8xf32>
    %50 = math.tanh %49 : vector<1x8xf32>
    %cst_23 = arith.constant 1.000000e+01 : f32
    %51 = vector.broadcast %cst_23 : f32 to vector<1x8xf32>
    %52 = arith.mulf %51, %50 : vector<1x8xf32>
    %53 = arith.index_cast %c1_i32 : i32 to index
    %c0_24 = arith.constant 0 : index
    %c0_25 = arith.constant 0 : index
    %54 = vector.load %arg8[%53, %c0_24, %c0_25] : memref<2x1x8xf32, #tpu.memory_space<vmem>>, vector<1x1x8xf32>
    %55 = vector.shape_cast %54 : vector<1x1x8xf32> to vector<1x8xf32>
    %56 = vector.shape_cast %52 : vector<1x8xf32> to vector<1x1x8xf32>
    tpu.vector_store %arg8[%53, %c0_24, %c0_25], %56 {strides = array<i32>} : memref<2x1x8xf32, #tpu.memory_space<vmem>>, vector<1x1x8xf32>,
    %c2_i32 = arith.constant 2 : i32
    return
  }
  func.func @transform_0(%arg0: i32, %arg1: i32) -> (i32, i32, i32) {
    %c0_i32 = arith.constant 0 : i32
    %c0_i32_0 = arith.constant 0 : i32
    return %arg0, %c0_i32, %arg1 : i32, i32, i32
  }
  func.func @transform_1(%arg0: i32, %arg1: i32) -> (i32, i32, i32) {
    %c0_i32 = arith.constant 0 : i32
    %c0_i32_0 = arith.constant 0 : i32
    %c0_i32_1 = arith.constant 0 : i32
    return %arg0, %c0_i32, %c0_i32_0 : i32, i32, i32
  }
  func.func @transform_2(%arg0: i32, %arg1: i32) -> (i32, i32) {
    %c0_i32 = arith.constant 0 : i32
    %c0_i32_0 = arith.constant 0 : i32
    %c0_i32_1 = arith.constant 0 : i32
    return %c0_i32, %c0_i32_0 : i32, i32
  }
  func.func @transform_3(%arg0: i32, %arg1: i32) -> (i32, i32) {
    %c0_i32 = arith.constant 0 : i32
    %c0_i32_0 = arith.constant 0 : i32
    %c0_i32_1 = arith.constant 0 : i32
    return %c0_i32, %c0_i32_0 : i32, i32
  }
  func.func @transform_4(%arg0: i32, %arg1: i32) -> (i32, i32) {
    %c0_i32 = arith.constant 0 : i32
    %c0_i32_0 = arith.constant 0 : i32
    %c0_i32_1 = arith.constant 0 : i32
    return %c0_i32, %c0_i32_0 : i32, i32
  }
  func.func @transform_5(%arg0: i32, %arg1: i32) -> (i32, i32, i32) {
    %c0_i32 = arith.constant 0 : i32
    %c0_i32_0 = arith.constant 0 : i32
    return %arg0, %c0_i32, %arg1 : i32, i32, i32
  }
  func.func @transform_6(%arg0: i32, %arg1: i32) -> (i32, i32, i32) {
    %c0_i32 = arith.constant 0 : i32
    %c0_i32_0 = arith.constant 0 : i32
    return %arg0, %c0_i32, %arg1 : i32, i32, i32
  }
}

</mosaic_0001>

<llo_original>
// kernel: tpu_custom_call.1
$region0: #{tpu_custom_call.1}
  #allocation0 [shape = 'u32[]', space=smem, size = 0x4, offset = 0x4, fixed_abs, tag = 'smem constant byte address 0x4 - core index']
  #allocation1 [shape = 'u32[72,128]{1,0:T(1,128)}', space=vmem, size = 0x9000, scoped, tag = 'internal scratch']
  %s0 = inlined_call_operand.vmem [shape: f32[2,16,8], index: 0, kind: input, shape index: {}]
  %s1 = inlined_call_operand.vmem [shape: f32[2,32,1], index: 1, kind: input, shape index: {}]
  %s2 = inlined_call_operand.vmem [shape: f32[32,16], index: 2, kind: input, shape index: {}]
  %s3 = inlined_call_operand.vmem [shape: f32[32,1], index: 3, kind: input, shape index: {}]
  %s4 = inlined_call_operand.vmem [shape: f32[32,1], index: 4, kind: input, shape index: {}]
  %s5 = inlined_call_operand.vmem [shape: f32[2,32,8], index: 5, kind: output, shape index: {0}]
  %s6 = inlined_call_operand.hbm [shape: f32[2,1,8], index: 6, kind: output, shape index: {1}]
  %7 = xla_tuple %s5, %s6
  %s8 = sld [smem:[#allocation0]]
  $region38: #{tpu_custom_call.1} parent=0
    _
  %s10 = ssub.s32 1, %s8
  %s11 = scalar_select 0, %s10, %s8
  $region1: #{tpu_custom_call.1} parent=0
    #allocation2 [shape = 'u8[1024]{0}', space=vmem, size = 0x400, scoped, tag = 'output window, operand 1, single buffered']
    #allocation3 [shape = 's32[1]{0}', space=sflag, size = 0x4, scoped, tag = 'scoped memory for tpu_custom_call.1']
    %12 = vsyncpa [#allocation3], 0
    // Predicated region
    $region2: #{tpu_custom_call.1} parent=1 // pred_check
      _
    $region3: #{tpu_custom_call.1} parent=1 // pred_check_branch
      %14 = sbr.rel (0) target = $region5
    $region4: #{tpu_custom_call.1} parent=1 // pred_region
      _
    $region5: #{tpu_custom_call.1} parent=1 // pred_fallthru
      _
    // Predicated region
    $region6: #{tpu_custom_call.1} parent=1 // pred_check
      _
    $region7: #{tpu_custom_call.1} parent=1 // pred_check_branch
      %16 = sbr.rel (0) target = $region9
    $region8: #{tpu_custom_call.1} parent=1 // pred_region
      _
    $region9: #{tpu_custom_call.1} parent=1 // pred_fallthru
      _
    // Predicated region
    $region10: #{tpu_custom_call.1} parent=1 // pred_check
      _
    $region11: #{tpu_custom_call.1} parent=1 // pred_check_branch
      %18 = sbr.rel (0) target = $region13
    $region12: #{tpu_custom_call.1} parent=1 // pred_region
      _
    $region13: #{tpu_custom_call.1} parent=1 // pred_fallthru
      _
    // Predicated region
    $region14: #{tpu_custom_call.1} parent=1 // pred_check
      _
    $region15: #{tpu_custom_call.1} parent=1 // pred_check_branch
      %20 = sbr.rel (0) target = $region17
    $region16: #{tpu_custom_call.1} parent=1 // pred_region
      _
    $region17: #{tpu_custom_call.1} parent=1 // pred_fallthru
      _
    // Predicated region
    $region18: #{tpu_custom_call.1} parent=1 // pred_check
      _
    $region19: #{tpu_custom_call.1} parent=1 // pred_check_branch
      %22 = sbr.rel (0) target = $region21
    $region20: #{tpu_custom_call.1} parent=1 // pred_region
      _
    $region21: #{tpu_custom_call.1} parent=1 // pred_fallthru
      _
    %v23 = vld [vmem:[%s2] sm:$0xff]
    %v24 = vld [vmem:[%s2 + $0x8] sm:$0xff]
    %v25 = vld [vmem:[%s2 + $0x10] sm:$0xff]
    %v26 = vld [vmem:[%s2 + $0x18] sm:$0xff]
    %v27 = vld [vmem:[%s3] sm:$0xff]
    %v28 = vld [vmem:[%s3 + $0x8] sm:$0xff]
    %v29 = vld [vmem:[%s3 + $0x10] sm:$0xff]
    %v30 = vld [vmem:[%s3 + $0x18] sm:$0xff]
    %32 = vset.pattern.permute.xlu0 0
    %33 = vperm.xlu0 %32, %v27
    %v34 = vpop.permute.xlu0 %33
    %37 = vset.pattern.permute.xlu0 0
    %38 = vperm.xlu0 %37, %v28
    %v39 = vpop.permute.xlu0 %38
    %42 = vset.pattern.permute.xlu0 0
    %43 = vperm.xlu0 %42, %v29
    %v44 = vpop.permute.xlu0 %43
    %47 = vset.pattern.permute.xlu0 0
    %48 = vperm.xlu0 %47, %v30
    %v49 = vpop.permute.xlu0 %48
    %v51 = vld [vmem:[%s4] sm:$0xff]
    %v52 = vld [vmem:[%s4 + $0x8] sm:$0xff]
    %v53 = vld [vmem:[%s4 + $0x10] sm:$0xff]
    %v54 = vld [vmem:[%s4 + $0x18] sm:$0xff]
    %56 = vset.pattern.permute.xlu0 0
    %57 = vperm.xlu0 %56, %v51
    %v58 = vpop.permute.xlu0 %57
    %61 = vset.pattern.permute.xlu0 0
    %62 = vperm.xlu0 %61, %v52
    %v63 = vpop.permute.xlu0 %62
    %66 = vset.pattern.permute.xlu0 0
    %67 = vperm.xlu0 %66, %v53
    %v68 = vpop.permute.xlu0 %67
    %71 = vset.pattern.permute.xlu0 0
    %72 = vperm.xlu0 %71, %v54
    %v73 = vpop.permute.xlu0 %72
    %v75 = vld [vmem:[%s0] sm:$0xff]
    %v76 = vld [vmem:[%s0 + $0x8] sm:$0xff]
    %vm77 = vcmask 130048
    %v79 = vsel %vm77, %v23, 0
    %v82 = vsel %vm77, %v24, 0
    %v85 = vsel %vm77, %v25, 0
    %v88 = vsel %vm77, %v26, 0
    %90 = vmatpush.msra.mxu0 0.0
    %91 = vmatpush.msra.mxu0 0.0
    %92 = vmatpush.msra.mxu0 0.0
    %93 = vmatpush.msra.mxu0 0.0
    %94 = vmatpush.msra.mxu0 0.0
    %95 = vmatpush.msra.mxu0 0.0
    %96 = vmatpush.msra.mxu0 0.0
    %97 = vmatpush.msra.mxu0 0.0
    %98 = vmatpush.msra.mxu0 0.0
    %99 = vmatpush.msra.mxu0 0.0
    %100 = vmatpush.msra.mxu0 0.0
    %101 = vmatpush.msra.mxu0 0.0
    %102 = vmatpush.msra.mxu0 0.0
    %103 = vmatpush.msra.mxu0 0.0
    %104 = vmatpush.msra.mxu0 %v76
    %105 = vmatpush.msra.mxu0 %v75
    %106 = vmatmul.f32.gmra.mxu0 %v79
    %v107 = vpop.f32.mrf.mxu0
    %v108 = vadd.f32 %v34, %v107
    %109 = vmatmul.f32.gmra.mxu0 %v82
    %v110 = vpop.f32.mrf.mxu0
    %v111 = vadd.f32 %v39, %v110
    %112 = vmatmul.f32.gmra.mxu0 %v85
    %v113 = vpop.f32.mrf.mxu0
    %v114 = vadd.f32 %v44, %v113
    %115 = vmatmul.f32.gmra.mxu0 %v88
    %v116 = vpop.f32.mrf.mxu0
    %v117 = vadd.f32 %v49, %v116
    %118 = vdwg.mxu0
    %vm119 = vcmask 64512
    %120 = vst.msk [vmem:[%s5] sm:$0xff] %vm119, %v108
    %121 = vst.msk [vmem:[%s5 + $0x8] sm:$0xff] %vm119, %v111
    %122 = vst.msk [vmem:[%s5 + $0x10] sm:$0xff] %vm119, %v114
    %123 = vst.msk [vmem:[%s5 + $0x18] sm:$0xff] %vm119, %v117
    %v124 = vld [vmem:[%s1] sm:$0xff]
    %v125 = vld [vmem:[%s1 + $0x8] sm:$0xff]
    %v126 = vld [vmem:[%s1 + $0x10] sm:$0xff]
    %v127 = vld [vmem:[%s1 + $0x18] sm:$0xff]
    %129 = vset.pattern.permute.xlu0 0
    %130 = vperm.xlu0 %129, %v124
    %v131 = vpop.permute.xlu0 %130
    %134 = vset.pattern.permute.xlu0 0
    %135 = vperm.xlu0 %134, %v125
    %v136 = vpop.permute.xlu0 %135
    %139 = vset.pattern.permute.xlu0 0
    %140 = vperm.xlu0 %139, %v126
    %v141 = vpop.permute.xlu0 %140
    %144 = vset.pattern.permute.xlu0 0
    %145 = vperm.xlu0 %144, %v127
    %v146 = vpop.permute.xlu0 %145
    %v148 = vadd.f32 %v108, %v131
    %v149 = vadd.f32 %v111, %v136
    %v150 = vadd.f32 %v114, %v141
    %v151 = vadd.f32 %v117, %v146
    %v152 = vtanh.pop %v148
    %v153 = vtanh.pop %v149
    %v154 = vtanh.pop %v150
    %v155 = vtanh.pop %v151
    %v156 = vmul.f32 %v58, %v152
    %v157 = vmul.f32 %v63, %v153
    %v158 = vmul.f32 %v68, %v154
    %v159 = vmul.f32 %v73, %v155
    %v160 = vsel %vm119, %v156, 0.0
    %v161 = vsel %vm119, %v157, 0.0
    %v162 = vadd.f32 %v160, %v161
    %v163 = vsel %vm119, %v158, 0.0
    %v164 = vadd.f32 %v162, %v163
    %v165 = vsel %vm119, %v159, 0.0
    %v166 = vadd.f32 %v164, %v165
    %v167 = vrot.slane %v166, 4
    %v168 = vadd.f32 %v166, %v167
    %v169 = vrot.slane %v168, 2
    %v170 = vadd.f32 %v168, %v169
    %v171 = vrot.slane %v170, 1
    %v172 = vadd.f32 %v170, %v171
    %v173 = vtanh.pop %v172
    %v174 = vmul.f32 %v173, 10.0
    %vm175 = vcmask 57344
    %176 = vst.msk [vmem:[#allocation2] sm:$0x1] %vm175, %v174
    %s177 = scalar_lea.vmem %s0, 16
    %v178 = vld [vmem:[%s177] sm:$0xff]
    %v179 = vld [vmem:[%s177 + $0x8] sm:$0xff]
    %180 = vmatpush.msra.mxu0 0.0
    %181 = vmatpush.msra.mxu0 0.0
    %182 = vmatpush.msra.mxu0 0.0
    %183 = vmatpush.msra.mxu0 0.0
    %184 = vmatpush.msra.mxu0 0.0
    %185 = vmatpush.msra.mxu0 0.0
    %186 = vmatpush.msra.mxu0 0.0
    %187 = vmatpush.msra.mxu0 0.0
    %188 = vmatpush.msra.mxu0 0.0
    %189 = vmatpush.msra.mxu0 0.0
    %190 = vmatpush.msra.mxu0 0.0
    %191 = vmatpush.msra.mxu0 0.0
    %192 = vmatpush.msra.mxu0 0.0
    %193 = vmatpush.msra.mxu0 0.0
    %194 = vmatpush.msra.mxu0 %v179
    %195 = vmatpush.msra.mxu0 %v178
    %196 = vmatmul.f32.gmra.mxu0 %v79
    %v197 = vpop.f32.mrf.mxu0
    %v198 = vadd.f32 %v34, %v197
    %199 = vmatmul.f32.gmra.mxu0 %v82
    %v200 = vpop.f32.mrf.mxu0
    %v201 = vadd.f32 %v39, %v200
    %202 = vmatmul.f32.gmra.mxu0 %v85
    %v203 = vpop.f32.mrf.mxu0
    %v204 = vadd.f32 %v44, %v203
    %205 = vmatmul.f32.gmra.mxu0 %v88
    %v206 = vpop.f32.mrf.mxu0
    %v207 = vadd.f32 %v49, %v206
    %208 = vdwg.mxu0
    %s209 = scalar_lea.vmem %s5, 32
    %210 = vst.msk [vmem:[%s209] sm:$0xff] %vm119, %v198
    %211 = vst.msk [vmem:[%s209 + $0x8] sm:$0xff] %vm119, %v201
    %212 = vst.msk [vmem:[%s209 + $0x10] sm:$0xff] %vm119, %v204
    %213 = vst.msk [vmem:[%s209 + $0x18] sm:$0xff] %vm119, %v207
    %s214 = scalar_lea.vmem %s1, 32
    %v215 = vld [vmem:[%s214] sm:$0xff]
    %v216 = vld [vmem:[%s214 + $0x8] sm:$0xff]
    %v217 = vld [vmem:[%s214 + $0x10] sm:$0xff]
    %v218 = vld [vmem:[%s214 + $0x18] sm:$0xff]
    %220 = vset.pattern.permute.xlu0 0
    %221 = vperm.xlu0 %220, %v215
    %v222 = vpop.permute.xlu0 %221
    %225 = vset.pattern.permute.xlu0 0
    %226 = vperm.xlu0 %225, %v216
    %v227 = vpop.permute.xlu0 %226
    %230 = vset.pattern.permute.xlu0 0
    %231 = vperm.xlu0 %230, %v217
    %v232 = vpop.permute.xlu0 %231
    %235 = vset.pattern.permute.xlu0 0
    %236 = vperm.xlu0 %235, %v218
    %v237 = vpop.permute.xlu0 %236
    %v239 = vadd.f32 %v198, %v222
    %v240 = vadd.f32 %v201, %v227
    %v241 = vadd.f32 %v204, %v232
    %v242 = vadd.f32 %v207, %v237
    %v243 = vtanh.pop %v239
    %v244 = vtanh.pop %v240
    %v245 = vtanh.pop %v241
    %v246 = vtanh.pop %v242
    %v247 = vmul.f32 %v58, %v243
    %v248 = vmul.f32 %v63, %v244
    %v249 = vmul.f32 %v68, %v245
    %v250 = vmul.f32 %v73, %v246
    %v251 = vsel %vm119, %v247, 0.0
    %v252 = vsel %vm119, %v248, 0.0
    %v253 = vadd.f32 %v251, %v252
    %v254 = vsel %vm119, %v249, 0.0
    %v255 = vadd.f32 %v253, %v254
    %v256 = vsel %vm119, %v250, 0.0
    %v257 = vadd.f32 %v255, %v256
    %v258 = vrot.slane %v257, 4
    %v259 = vadd.f32 %v257, %v258
    %v260 = vrot.slane %v259, 2
    %v261 = vadd.f32 %v259, %v260
    %v262 = vrot.slane %v261, 1
    %v263 = vadd.f32 %v261, %v262
    %v264 = vtanh.pop %v263
    %v265 = vmul.f32 %v264, 10.0
    %s266 = scalar_lea.vmem [#allocation2], 1
    %267 = vst.msk [vmem:[%s266] sm:$0x1] %vm175, %v265
    // Predicated region
    $region22: #{tpu_custom_call.1} parent=1 // pred_check
      _
    $region23: #{tpu_custom_call.1} parent=1 // pred_check_branch
      %269 = sbr.rel (0) target = $region25
    $region24: #{tpu_custom_call.1} parent=1 // pred_region
      _
    $region25: #{tpu_custom_call.1} parent=1 // pred_fallthru
      _
    // Predicated region
    $region26: #{tpu_custom_call.1} parent=1 // pred_check
      _
    $region27: #{tpu_custom_call.1} parent=1 // pred_check_branch
      %271 = sbr.rel (0) target = $region29
    $region28: #{tpu_custom_call.1} parent=1 // pred_region
      %273 = vsyncadd [#allocation3], 0
      %s274 = sshll.u32 [#allocation2], 4
      %s275 = int_to_ptr.vmem [resolvable:$true] %s274
      %s276 = sshll.u32 %s6, 4
      %s277 = int_to_ptr.hbm [resolvable:$true] %s276
      %282 = dma.vmem_to_hbm [thread:$0]  %s275, 32, %s277, [#allocation3], 16, 16, 1
    $region29: #{tpu_custom_call.1} parent=1 // pred_fallthru
      _
    // Predicated region
    $region30: #{tpu_custom_call.1} parent=1 // pred_check
      _
    $region31: #{tpu_custom_call.1} parent=1 // pred_check_branch
      %284 = sbr.rel (0) target = $region33
    $region32: #{tpu_custom_call.1} parent=1 // pred_region
      _
    $region33: #{tpu_custom_call.1} parent=1 // pred_fallthru
      _
    // Predicated region
    $region34: #{tpu_custom_call.1} parent=1 // pred_check
      _
    $region35: #{tpu_custom_call.1} parent=1 // pred_check_branch
      %286 = sbr.rel (0) target = $region37
    $region36: #{tpu_custom_call.1} parent=1 // pred_region
      %288 = dma.done [#allocation3], 32
    $region37: #{tpu_custom_call.1} parent=1 // pred_fallthru
      _
    %289 = vsyncpa [#allocation3], 1

</llo_original>
